<compile_context>
chip_gen: v5e
topology: v5e:2x2
jax: 0.10.0
libtpu: 0.0.40
codegen_flags: <defaults>
</compile_context>

<pallas_src>
import functools

import jax
import jax.numpy as jnp
from jax.experimental import pallas as pl
from jax.experimental.pallas import tpu as pltpu

EPS = 1e-5
LANE = 128
VMEM_LIMIT = 32 * 1024 * 1024   # explicit budget; safe on v5e/v6e (128 MiB) and v7x (64 MiB)


def _round_up(v, m):
    return (v + m - 1) // m * m


def _tiling(n, block_rows):
    """Row-tile size, padded row count and #core-splits for the stats pass."""
    tn = min(block_rows, _round_up(n, 16))        # multiple of 16 (bf16 sublane packing)
    if n > tn:
        np_ = _round_up(n, 2 * tn)                # even #tiles -> 2-way core split
        split = 2
    else:
        np_ = tn                                  # single tile -> no split
        split = 1
    return tn, np_, split


def _stats_kernel(x_ref, w1_ref, sum_ref, sumsq_ref, *,
                  n_valid, tile_rows, tiles_per_core):
    """Pass 1: per-column sum / sum-of-squares of g = x @ W1 (no bias).

    Grid is (split, tiles_per_core): the leading "parallel" axis shards the row
    range across TensorCores (per-core partial accumulators, reduced in the JAX
    fold); the inner "arbitrary" axis accumulates into the resident (1, Hp)
    block.  Only tiles that straddle the valid-row boundary pay for masking, so
    padded rows may hold arbitrary data (needed when activations stay padded
    across stacked layers).
    """
    c = pl.program_id(0)
    i = pl.program_id(1)

    @pl.when(i == 0)
    def _init():
        sum_ref[...] = jnp.zeros_like(sum_ref)
        sumsq_ref[...] = jnp.zeros_like(sumsq_ref)

    g = jnp.dot(x_ref[...], w1_ref[...], preferred_element_type=jnp.float32)

    row_start = (c * tiles_per_core + i) * tile_rows
    fully_valid = row_start + tile_rows <= n_valid

    @pl.when(fully_valid)
    def _unmasked():
        sum_ref[...] += jnp.sum(g, axis=0, keepdims=True)
        sumsq_ref[...] += jnp.sum(g * g, axis=0, keepdims=True)

    @pl.when(jnp.logical_not(fully_valid))
    def _masked():
        row = jax.lax.broadcasted_iota(jnp.int32, g.shape, 0) + row_start
        gm = jnp.where(row < n_valid, g, 0.0)
        sum_ref[...] += jnp.sum(gm, axis=0, keepdims=True)
        sumsq_ref[...] += jnp.sum(gm * gm, axis=0, keepdims=True)


def _apply_kernel(x_ref, w1_ref, scale_ref, shift_ref, w2_ref, b2_ref, o_ref):
    """Pass 2: out = relu((x @ W1) * scale + shift) @ W2 + b2 (folded BN)."""
    g = jnp.dot(x_ref[...], w1_ref[...], preferred_element_type=jnp.float32)
    hn = g * scale_ref[...] + shift_ref[...]      # folded BN affine: 2 VALU ops/elem
    hr = jnp.maximum(hn, 0.0)
    out = jnp.dot(hr.astype(w2_ref.dtype), w2_ref[...],
                  preferred_element_type=jnp.float32) + b2_ref[...]
    o_ref[...] = out.astype(o_ref.dtype)


def _pad2(a, rows, cols, dtype):
    a = jnp.asarray(a, dtype)
    return jnp.pad(a, ((0, rows - a.shape[0]), (0, cols - a.shape[1])))


def _prepare_mlpgin_params(w1, gamma, beta, w2, b2, matmul_dtype):
    """Pad params to lane-aligned shapes; matmul operands in matmul_dtype."""
    d, h = w1.shape
    dp, hp = _round_up(d, LANE), _round_up(h, LANE)
    w1p = _pad2(w1, dp, hp, matmul_dtype)
    w2p = _pad2(w2, hp, dp, matmul_dtype)
    gammap = _pad2(jnp.reshape(gamma, (1, -1)), 1, hp, jnp.float32)
    betap = _pad2(jnp.reshape(beta, (1, -1)), 1, hp, jnp.float32)
    b2p = _pad2(jnp.reshape(b2, (1, -1)), 1, dp, jnp.float32)
    return w1p, gammap, betap, w2p, b2p


def _mlpgin_padded(xp, w1p, gammap, betap, w2p, b2p, *,
                   n_valid, block_rows, out_dtype):
    """MLPGIN on an already lane/tile-padded activation matrix.

    xp: (Np, Dp) in the matmul dtype; returns (Np, Dp) in out_dtype (padded
    rows/cols hold garbage/zeros and may be fed straight into the next layer).
    """
    np_, dp = xp.shape
    hp = w1p.shape[1]
    tn, np_expect, split = _tiling(n_valid, block_rows)
    assert np_ == np_expect and w1p.shape[0] == dp and w2p.shape == (hp, dp)
    num_tiles = np_ // tn
    tiles_per_core = num_tiles // split

    f32 = jnp.float32
    cp_stats = pltpu.CompilerParams(
        dimension_semantics=("parallel", "arbitrary"),
        vmem_limit_bytes=VMEM_LIMIT)
    cp_apply = pltpu.CompilerParams(
        dimension_semantics=("parallel",),
        vmem_limit_bytes=VMEM_LIMIT)

    # ---- pass 1: per-core partial column sum / sumsq of g = x @ W1 -----------
    sum_p, sumsq_p = pl.pallas_call(
        functools.partial(_stats_kernel, n_valid=n_valid, tile_rows=tn,
                          tiles_per_core=tiles_per_core),
        out_shape=(jax.ShapeDtypeStruct((1, split * hp), f32),
                   jax.ShapeDtypeStruct((1, split * hp), f32)),
        grid=(split, tiles_per_core),
        in_specs=[
            pl.BlockSpec((tn, dp), lambda c, i: (c * tiles_per_core + i, 0)),
            pl.BlockSpec((dp, hp), lambda c, i: (0, 0)),     # W1 resident
        ],
        out_specs=(
            pl.BlockSpec((1, hp), lambda c, i: (0, c)),       # per-core accumulator
            pl.BlockSpec((1, hp), lambda c, i: (0, c)),
        ),
        compiler_params=cp_stats,
    )(xp, w1p)

    # ---- tiny (1, Hp) BN fold in plain JAX ------------------------------------
    nf = jnp.float32(n_valid)
    sum_g = jnp.sum(sum_p.reshape(split, hp), axis=0, keepdims=True)
    sumsq_g = jnp.sum(sumsq_p.reshape(split, hp), axis=0, keepdims=True)
    mean_g = sum_g / nf
    var = jnp.maximum(sumsq_g / nf - mean_g * mean_g, 0.0)   # biased, like BatchNorm1d
    inv = jax.lax.rsqrt(var + EPS)
    scale = gammap * inv
    # Linear-1 bias cancels inside BatchNorm; only -mean_g survives.
    shift = betap - mean_g * scale

    # ---- pass 2: folded BN + ReLU + second Linear, parallel over row tiles ----
    outp = pl.pallas_call(
        _apply_kernel,
        out_shape=jax.ShapeDtypeStruct((np_, dp), out_dtype),
        grid=(num_tiles,),
        in_specs=[
            pl.BlockSpec((tn, dp), lambda i: (i, 0)),    # x tile (double-buffered)
            pl.BlockSpec((dp, hp), lambda i: (0, 0)),    # W1 resident
            pl.BlockSpec((1, hp), lambda i: (0, 0)),     # scale
            pl.BlockSpec((1, hp), lambda i: (0, 0)),     # shift
            pl.BlockSpec((hp, dp), lambda i: (0, 0)),    # W2 resident
            pl.BlockSpec((1, dp), lambda i: (0, 0)),     # b2
        ],
        out_specs=pl.BlockSpec((tn, dp), lambda i: (i, 0)),
        compiler_params=cp_apply,
    )(xp, w1p, scale, shift, w2p, b2p)
    return outp


def mlpgin_forward(x, w1, b1, gamma, beta, w2, b2, *,
                   block_rows=1024, matmul_dtype=jnp.bfloat16, out_dtype=None):
    """Single MLPGIN block: relu(BN(x @ W1 + b1)) @ W2 + b2.

    b1 is accepted for interface fidelity but cancels exactly inside BatchNorm.
    """
    del b1
    n, d = x.shape
    tn, np_, _ = _tiling(n, block_rows)
    dp = _round_up(d, LANE)
    xp = _pad2(x, np_, dp, matmul_dtype)
    params = _prepare_mlpgin_params(w1, gamma, beta, w2, b2, matmul_dtype)
    outp = _mlpgin_padded(xp, *params, n_valid=n, block_rows=block_rows,
                          out_dtype=(out_dtype or x.dtype))
    return outp[:n, :d]


def mlpgin_stack_forward(x, layer_params, *, block_rows=1024,
                         matmul_dtype=jnp.bfloat16, out_dtype=None):
    """Several MLPGIN blocks back to back (the dense cores of conv1..conv3).

    Activations stay in the padded lane-aligned matmul-dtype layout across all
    layers: one pad before layer 0, one slice after the last layer.
    """
    n, d = x.shape
    _, np_, _ = _tiling(n, block_rows)
    dp = _round_up(d, LANE)
    xp = _pad2(x, np_, dp, matmul_dtype)
    n_layers = len(layer_params)
    for li, (w1, _b1, gamma, beta, w2, b2) in enumerate(layer_params):
        pp = _prepare_mlpgin_params(w1, gamma, beta, w2, b2, matmul_dtype)
        last = li == n_layers - 1
        layer_out_dtype = (out_dtype or x.dtype) if last else matmul_dtype
        xp = _mlpgin_padded(xp, *pp, n_valid=n, block_rows=block_rows,
                            out_dtype=layer_out_dtype)
    return xp[:n, :d]


def reference(x, w1, b1, gamma, beta, w2, b2):
    h = x @ w1 + b1
    mean = h.mean(axis=0, keepdims=True)
    var = ((h - mean) ** 2).mean(axis=0, keepdims=True)     # biased, like BatchNorm1d
    hn = (h - mean) / jnp.sqrt(var + EPS) * gamma + beta
    return jnp.maximum(hn, 0.0) @ w2 + b2


if __name__ == "__main__":
    N, D = 200, 32          # 200 node embeddings, emb_dim=32 -> hidden=64
    H = 2 * D

    key = jax.random.PRNGKey(0)
    keys = jax.random.split(key, 1 + 6 * 3)
    x = jax.random.normal(keys[0], (N, D), dtype=jnp.float32)

    def make_layer(ks):
        k1, kb1, k2, kb2, kg, kb = ks
        w1 = jax.random.uniform(k1, (D, H), minval=-1.0, maxval=1.0) / jnp.sqrt(D)
        b1 = jax.random.uniform(kb1, (1, H), minval=-1.0, maxval=1.0) / jnp.sqrt(D)
        w2 = jax.random.uniform(k2, (H, D), minval=-1.0, maxval=1.0) / jnp.sqrt(H)
        b2 = jax.random.uniform(kb2, (1, D), minval=-1.0, maxval=1.0) / jnp.sqrt(H)
        gamma = 1.0 + 0.1 * jax.random.normal(kg, (1, H), dtype=jnp.float32)
        beta = 0.1 * jax.random.normal(kb, (1, H), dtype=jnp.float32)
        return (w1, b1, gamma, beta, w2, b2)

    layers = tuple(make_layer(keys[1 + 6 * i: 1 + 6 * (i + 1)]) for i in range(3))
    w1, b1, gamma, beta, w2, b2 = layers[0]
    ref = reference(x, w1, b1, gamma, beta, w2, b2)

    # 1) f32 MXU path, 2 row tiles -> exercises the split-core stats pass and
    #    the pl.when-gated boundary mask; tight tolerance vs. reference.
    fwd_f32 = jax.jit(functools.partial(mlpgin_forward, block_rows=128,
                                        matmul_dtype=jnp.float32))
    out_f32 = fwd_f32(x, w1, b1, gamma, beta, w2, b2)
    jax.block_until_ready(out_f32)
    assert out_f32.shape == (N, D)
    assert jnp.allclose(out_f32, ref, atol=1e-4, rtol=1e-4), "f32 path mismatch"

    # 2) default path: bf16 MXU inputs (f32 accumulation), large row tiles.
    fwd_bf16 = jax.jit(mlpgin_forward)
    out_bf16 = fwd_bf16(x, w1, b1, gamma, beta, w2, b2)
    jax.block_until_ready(out_bf16)
    assert out_bf16.shape == (N, D)
    assert jnp.allclose(out_bf16, ref, atol=3e-2, rtol=3e-2), "bf16 path mismatch"

    # 3) conv1..conv3 dense cores back to back: activations kept in the padded
    #    lane-aligned bf16 layout across all three layers (one pad, one slice).
    #    Small block_rows forces multiple tiles and non-zero padded rows so the
    #    boundary masking is exercised end to end.
    stack_fwd = jax.jit(functools.partial(mlpgin_stack_forward, block_rows=64))
    out_stack = stack_fwd(x, layers)
    jax.block_until_ready(out_stack)
    ref_stack = x
    for lp in layers:
        ref_stack = reference(ref_stack, *lp)
    assert out_stack.shape == (N, D)
    assert bool(jnp.all(jnp.isfinite(out_stack)))
    assert jnp.allclose(out_stack, ref_stack, atol=5e-2, rtol=5e-2), "stack mismatch"

    print("KERNEL_OK")
</pallas_src>

<mosaic_0001>
module attributes {stable_mosaic.version = 11 : i64} {
  func.func @_stats_kernel(%arg0: i32, %arg1: i32, %arg2: memref<128x128xf32, #tpu.memory_space<vmem>>, %arg3: memref<128x128xf32, #tpu.memory_space<vmem>>, %arg4: memref<1x128xf32, #tpu.memory_space<vmem>>, %arg5: memref<1x128xf32, #tpu.memory_space<vmem>>) attributes {dimension_semantics = [#tpu.dimension_semantics<parallel>, #tpu.dimension_semantics<arbitrary>], iteration_bounds = array<i64: 2, 1>, scalar_prefetch = 0 : i64, scratch_operands = 0 : i64, tpu.core_type = #tpu.core_type<tc>, window_params = [{transform_indices = @transform_0, window_bounds = array<i64: 128, 128>}, {pipeline_mode = #tpu.pipeline_mode<synchronous>, transform_indices = @transform_1, window_bounds = array<i64: 128, 128>}, {transform_indices = @transform_2, window_bounds = array<i64: 1, 128>}, {transform_indices = @transform_3, window_bounds = array<i64: 1, 128>}]} {
    %c0_i32 = arith.constant 0 : i32
    %0 = arith.cmpi eq, %arg1, %c0_i32 : i32
    %1 = arith.extui %0 : i1 to i32
    %c0_i32_0 = arith.constant 0 : i32
    %2 = arith.cmpi ne, %1, %c0_i32_0 : i32
    scf.if %2 {
      %cst_7 = arith.constant 0.000000e+00 : f32
      %16 = vector.broadcast %cst_7 : f32 to vector<1x128xf32>
      %c0_8 = arith.constant 0 : index
      %c0_9 = arith.constant 0 : index
      %17 = vector.load %arg4[%c0_8, %c0_9] : memref<1x128xf32, #tpu.memory_space<vmem>>, vector<1x128xf32>
      tpu.vector_store %arg4[%c0_8, %c0_9], %16 {strides = array<i32>} : memref<1x128xf32, #tpu.memory_space<vmem>>, vector<1x128xf32>,
      %cst_10 = arith.constant 0.000000e+00 : f32
      %18 = vector.broadcast %cst_10 : f32 to vector<1x128xf32>
      %c0_11 = arith.constant 0 : index
      %c0_12 = arith.constant 0 : index
      %19 = vector.load %arg5[%c0_11, %c0_12] : memref<1x128xf32, #tpu.memory_space<vmem>>, vector<1x128xf32>
      tpu.vector_store %arg5[%c0_11, %c0_12], %18 {strides = array<i32>} : memref<1x128xf32, #tpu.memory_space<vmem>>, vector<1x128xf32>,
    } else {
    }
    %c0 = arith.constant 0 : index
    %c0_1 = arith.constant 0 : index
    %3 = vector.load %arg2[%c0, %c0_1] : memref<128x128xf32, #tpu.memory_space<vmem>>, vector<128x128xf32>
    %c0_2 = arith.constant 0 : index
    %c0_3 = arith.constant 0 : index
    %4 = vector.load %arg3[%c0_2, %c0_3] : memref<128x128xf32, #tpu.memory_space<vmem>>, vector<128x128xf32>
    %cst = arith.constant dense<0.000000e+00> : vector<128x128xf32>
    %5 = tpu.matmul %3, %4, %cst {dimension_numbers = #tpu.dot_dimension_numbers<[1], [0], [0], [1], [0, 0, 1, 1], [], []>} : vector<128x128xf32>, vector<128x128xf32>, vector<128x128xf32> -> vector<128x128xf32>
    %c1_i32 = arith.constant 1 : i32
    %6 = arith.muli %arg0, %c1_i32 : i32
    %7 = arith.addi %6, %arg1 : i32
    %c128_i32 = arith.constant 128 : i32
    %8 = arith.muli %7, %c128_i32 : i32
    %c128_i32_4 = arith.constant 128 : i32
    %9 = arith.addi %8, %c128_i32_4 : i32
    %c200_i32 = arith.constant 200 : i32
    %10 = arith.cmpi sle, %9, %c200_i32 : i32
    %11 = arith.extui %10 : i1 to i32
    %c0_i32_5 = arith.constant 0 : i32
    %12 = arith.cmpi ne, %11, %c0_i32_5 : i32
    scf.if %12 {
      %c0_7 = arith.constant 0 : index
      %c0_8 = arith.constant 0 : index
      %16 = vector.load %arg4[%c0_7, %c0_8] : memref<1x128xf32, #tpu.memory_space<vmem>>, vector<1x128xf32>
      %cst_9 = arith.constant dense<0.000000e+00> : vector<128xf32>
      %17 = vector.multi_reduction <add>, %5, %cst_9 [0] : vector<128x128xf32> to vector<128xf32>
      %18 = vector.shape_cast %17 : vector<128xf32> to vector<1x128xf32>
      %19 = arith.addf %16, %18 : vector<1x128xf32>
      %c0_10 = arith.constant 0 : index
      %c0_11 = arith.constant 0 : index
      %20 = vector.load %arg4[%c0_10, %c0_11] : memref<1x128xf32, #tpu.memory_space<vmem>>, vector<1x128xf32>
      tpu.vector_store %arg4[%c0_10, %c0_11], %19 {strides = array<i32>} : memref<1x128xf32, #tpu.memory_space<vmem>>, vector<1x128xf32>,
      %c0_12 = arith.constant 0 : index
      %c0_13 = arith.constant 0 : index
      %21 = vector.load %arg5[%c0_12, %c0_13] : memref<1x128xf32, #tpu.memory_space<vmem>>, vector<1x128xf32>
      %22 = arith.mulf %5, %5 : vector<128x128xf32>
      %cst_14 = arith.constant dense<0.000000e+00> : vector<128xf32>
      %23 = vector.multi_reduction <add>, %22, %cst_14 [0] : vector<128x128xf32> to vector<128xf32>
      %24 = vector.shape_cast %23 : vector<128xf32> to vector<1x128xf32>
      %25 = arith.addf %21, %24 : vector<1x128xf32>
      %c0_15 = arith.constant 0 : index
      %c0_16 = arith.constant 0 : index
      %26 = vector.load %arg5[%c0_15, %c0_16] : memref<1x128xf32, #tpu.memory_space<vmem>>, vector<1x128xf32>
      tpu.vector_store %arg5[%c0_15, %c0_16], %25 {strides = array<i32>} : memref<1x128xf32, #tpu.memory_space<vmem>>, vector<1x128xf32>,
    } else {
    }
    %true = arith.constant true
    %13 = arith.xori %10, %true : i1
    %14 = arith.extui %13 : i1 to i32
    %c0_i32_6 = arith.constant 0 : i32
    %15 = arith.cmpi ne, %14, %c0_i32_6 : i32
    scf.if %15 {
      %16 = tpu.iota {dimensions = array<i32: 0>} : vector<128x128xi32>
      %17 = vector.broadcast %8 : i32 to vector<128x128xi32>
      %18 = arith.addi %16, %17 : vector<128x128xi32>
      %c200_i32_7 = arith.constant 200 : i32
      %19 = vector.broadcast %c200_i32_7 : i32 to vector<128x128xi32>
      %20 = arith.cmpi slt, %18, %19 : vector<128x128xi32>
      %cst_8 = arith.constant 0.000000e+00 : f32
      %21 = vector.broadcast %cst_8 : f32 to vector<128x128xf32>
      %22 = arith.select %20, %5, %21 : vector<128x128xi1>, vector<128x128xf32>
      %c0_9 = arith.constant 0 : index
      %c0_10 = arith.constant 0 : index
      %23 = vector.load %arg4[%c0_9, %c0_10] : memref<1x128xf32, #tpu.memory_space<vmem>>, vector<1x128xf32>
      %cst_11 = arith.constant dense<0.000000e+00> : vector<128xf32>
      %24 = vector.multi_reduction <add>, %22, %cst_11 [0] : vector<128x128xf32> to vector<128xf32>
      %25 = vector.shape_cast %24 : vector<128xf32> to vector<1x128xf32>
      %26 = arith.addf %23, %25 : vector<1x128xf32>
      %c0_12 = arith.constant 0 : index
      %c0_13 = arith.constant 0 : index
      %27 = vector.load %arg4[%c0_12, %c0_13] : memref<1x128xf32, #tpu.memory_space<vmem>>, vector<1x128xf32>
      tpu.vector_store %arg4[%c0_12, %c0_13], %26 {strides = array<i32>} : memref<1x128xf32, #tpu.memory_space<vmem>>, vector<1x128xf32>,
      %c0_14 = arith.constant 0 : index
      %c0_15 = arith.constant 0 : index
      %28 = vector.load %arg5[%c0_14, %c0_15] : memref<1x128xf32, #tpu.memory_space<vmem>>, vector<1x128xf32>
      %29 = arith.mulf %22, %22 : vector<128x128xf32>
      %cst_16 = arith.constant dense<0.000000e+00> : vector<128xf32>
      %30 = vector.multi_reduction <add>, %29, %cst_16 [0] : vector<128x128xf32> to vector<128xf32>
      %31 = vector.shape_cast %30 : vector<128xf32> to vector<1x128xf32>
      %32 = arith.addf %28, %31 : vector<1x128xf32>
      %c0_17 = arith.constant 0 : index
      %c0_18 = arith.constant 0 : index
      %33 = vector.load %arg5[%c0_17, %c0_18] : memref<1x128xf32, #tpu.memory_space<vmem>>, vector<1x128xf32>
      tpu.vector_store %arg5[%c0_17, %c0_18], %32 {strides = array<i32>} : memref<1x128xf32, #tpu.memory_space<vmem>>, vector<1x128xf32>,
    } else {
    }
    return
  }
  func.func @transform_0(%arg0: i32, %arg1: i32) -> (i32, i32) {
    %c1_i32 = arith.constant 1 : i32
    %0 = arith.muli %arg0, %c1_i32 : i32
    %1 = arith.addi %0, %arg1 : i32
    %c0_i32 = arith.constant 0 : i32
    %c0_i32_0 = arith.constant 0 : i32
    return %1, %c0_i32 : i32, i32
  }
  func.func @transform_1(%arg0: i32, %arg1: i32) -> (i32, i32) {
    %c0_i32 = arith.constant 0 : i32
    %c0_i32_0 = arith.constant 0 : i32
    %c0_i32_1 = arith.constant 0 : i32
    return %c0_i32, %c0_i32_0 : i32, i32
  }
  func.func @transform_2(%arg0: i32, %arg1: i32) -> (i32, i32) {
    %c0_i32 = arith.constant 0 : i32
    %c0_i32_0 = arith.constant 0 : i32
    return %c0_i32, %arg0 : i32, i32
  }
  func.func @transform_3(%arg0: i32, %arg1: i32) -> (i32, i32) {
    %c0_i32 = arith.constant 0 : i32
    %c0_i32_0 = arith.constant 0 : i32
    return %c0_i32, %arg0 : i32, i32
  }
}

module attributes {stable_mosaic.version = 11 : i64} {
  func.func @_apply_kernel(%arg0: i32, %arg1: memref<128x128xf32, #tpu.memory_space<vmem>>, %arg2: memref<128x128xf32, #tpu.memory_space<vmem>>, %arg3: memref<1x128xf32, #tpu.memory_space<vmem>>, %arg4: memref<1x128xf32, #tpu.memory_space<vmem>>, %arg5: memref<128x128xf32, #tpu.memory_space<vmem>>, %arg6: memref<1x128xf32, #tpu.memory_space<vmem>>, %arg7: memref<128x128xf32, #tpu.memory_space<vmem>>) attributes {dimension_semantics = [#tpu.dimension_semantics<parallel>], iteration_bounds = array<i64: 2>, scalar_prefetch = 0 : i64, scratch_operands = 0 : i64, tpu.core_type = #tpu.core_type<tc>, window_params = [{transform_indices = @transform_0, window_bounds = array<i64: 128, 128>}, {pipeline_mode = #tpu.pipeline_mode<synchronous>, transform_indices = @transform_1, window_bounds = array<i64: 128, 128>}, {pipeline_mode = #tpu.pipeline_mode<synchronous>, transform_indices = @transform_2, window_bounds = array<i64: 1, 128>}, {pipeline_mode = #tpu.pipeline_mode<synchronous>, transform_indices = @transform_3, window_bounds = array<i64: 1, 128>}, {pipeline_mode = #tpu.pipeline_mode<synchronous>, transform_indices = @transform_4, window_bounds = array<i64: 128, 128>}, {pipeline_mode = #tpu.pipeline_mode<synchronous>, transform_indices = @transform_5, window_bounds = array<i64: 1, 128>}, {transform_indices = @transform_6, window_bounds = array<i64: 128, 128>}]} {
    %c0 = arith.constant 0 : index
    %c0_0 = arith.constant 0 : index
    %0 = vector.load %arg1[%c0, %c0_0] : memref<128x128xf32, #tpu.memory_space<vmem>>, vector<128x128xf32>
    %c0_1 = arith.constant 0 : index
    %c0_2 = arith.constant 0 : index
    %1 = vector.load %arg2[%c0_1, %c0_2] : memref<128x128xf32, #tpu.memory_space<vmem>>, vector<128x128xf32>
    %cst = arith.constant dense<0.000000e+00> : vector<128x128xf32>
    %2 = tpu.matmul %0, %1, %cst {dimension_numbers = #tpu.dot_dimension_numbers<[1], [0], [0], [1], [0, 0, 1, 1], [], []>} : vector<128x128xf32>, vector<128x128xf32>, vector<128x128xf32> -> vector<128x128xf32>
    %c0_3 = arith.constant 0 : index
    %c0_4 = arith.constant 0 : index
    %3 = vector.load %arg3[%c0_3, %c0_4] : memref<1x128xf32, #tpu.memory_space<vmem>>, vector<1x128xf32>
    %4 = vector.broadcast %3 : vector<1x128xf32> to vector<128x128xf32>
    %5 = arith.mulf %2, %4 : vector<128x128xf32>
    %c0_5 = arith.constant 0 : index
    %c0_6 = arith.constant 0 : index
    %6 = vector.load %arg4[%c0_5, %c0_6] : memref<1x128xf32, #tpu.memory_space<vmem>>, vector<1x128xf32>
    %7 = vector.broadcast %6 : vector<1x128xf32> to vector<128x128xf32>
    %8 = arith.addf %5, %7 : vector<128x128xf32>
    %cst_7 = arith.constant 0.000000e+00 : f32
    %9 = vector.broadcast %cst_7 : f32 to vector<128x128xf32>
    %10 = arith.maximumf %8, %9 : vector<128x128xf32>
    %c0_8 = arith.constant 0 : index
    %c0_9 = arith.constant 0 : index
    %11 = vector.load %arg5[%c0_8, %c0_9] : memref<128x128xf32, #tpu.memory_space<vmem>>, vector<128x128xf32>
    %cst_10 = arith.constant dense<0.000000e+00> : vector<128x128xf32>
    %12 = tpu.matmul %10, %11, %cst_10 {dimension_numbers = #tpu.dot_dimension_numbers<[1], [0], [0], [1], [0, 0, 1, 1], [], []>} : vector<128x128xf32>, vector<128x128xf32>, vector<128x128xf32> -> vector<128x128xf32>
    %c0_11 = arith.constant 0 : index
    %c0_12 = arith.constant 0 : index
    %13 = vector.load %arg6[%c0_11, %c0_12] : memref<1x128xf32, #tpu.memory_space<vmem>>, vector<1x128xf32>
    %14 = vector.broadcast %13 : vector<1x128xf32> to vector<128x128xf32>
    %15 = arith.addf %12, %14 : vector<128x128xf32>
    %c0_13 = arith.constant 0 : index
    %c0_14 = arith.constant 0 : index
    %16 = vector.load %arg7[%c0_13, %c0_14] : memref<128x128xf32, #tpu.memory_space<vmem>>, vector<128x128xf32>
    tpu.vector_store %arg7[%c0_13, %c0_14], %15 {strides = array<i32>} : memref<128x128xf32, #tpu.memory_space<vmem>>, vector<128x128xf32>,
    return
  }
  func.func @transform_0(%arg0: i32) -> (i32, i32) {
    %c0_i32 = arith.constant 0 : i32
    %c0_i32_0 = arith.constant 0 : i32
    return %arg0, %c0_i32 : i32, i32
  }
  func.func @transform_1(%arg0: i32) -> (i32, i32) {
    %c0_i32 = arith.constant 0 : i32
    %c0_i32_0 = arith.constant 0 : i32
    %c0_i32_1 = arith.constant 0 : i32
    return %c0_i32, %c0_i32_0 : i32, i32
  }
  func.func @transform_2(%arg0: i32) -> (i32, i32) {
    %c0_i32 = arith.constant 0 : i32
    %c0_i32_0 = arith.constant 0 : i32
    %c0_i32_1 = arith.constant 0 : i32
    return %c0_i32, %c0_i32_0 : i32, i32
  }
  func.func @transform_3(%arg0: i32) -> (i32, i32) {
    %c0_i32 = arith.constant 0 : i32
    %c0_i32_0 = arith.constant 0 : i32
    %c0_i32_1 = arith.constant 0 : i32
    return %c0_i32, %c0_i32_0 : i32, i32
  }
  func.func @transform_4(%arg0: i32) -> (i32, i32) {
    %c0_i32 = arith.constant 0 : i32
    %c0_i32_0 = arith.constant 0 : i32
    %c0_i32_1 = arith.constant 0 : i32
    return %c0_i32, %c0_i32_0 : i32, i32
  }
  func.func @transform_5(%arg0: i32) -> (i32, i32) {
    %c0_i32 = arith.constant 0 : i32
    %c0_i32_0 = arith.constant 0 : i32
    %c0_i32_1 = arith.constant 0 : i32
    return %c0_i32, %c0_i32_0 : i32, i32
  }
  func.func @transform_6(%arg0: i32) -> (i32, i32) {
    %c0_i32 = arith.constant 0 : i32
    %c0_i32_0 = arith.constant 0 : i32
    return %arg0, %c0_i32 : i32, i32
  }
}

</mosaic_0001>

<llo_original>
// kernel: mlpgin_forward.2
$region0: #{mlpgin_forward.2}
  #allocation0 [shape = 'u32[]', space=smem, size = 0x4, offset = 0x4, fixed_abs, tag = 'smem constant byte address 0x4 - core index']
  #allocation1 [shape = 'u32[72,128]{1,0:T(1,128)}', space=vmem, size = 0x9000, scoped, tag = 'internal scratch']
  %s0 = inlined_call_operand.vmem [shape: f32[256,128], index: 0, kind: input, shape index: {}]
  %s1 = inlined_call_operand.vmem [shape: f32[128,128], index: 1, kind: input, shape index: {}]
  %s2 = inlined_call_operand.vmem [shape: f32[1,256], index: 2, kind: output, shape index: {0}]
  %s3 = inlined_call_operand.vmem [shape: f32[1,256], index: 3, kind: output, shape index: {1}]
  %4 = xla_tuple %s2, %s3
  %s5 = sld [smem:[#allocation0]]
  $region61: #{mlpgin_forward.2} parent=0
    _
  %s7 = ssub.s32 1, %s5
  %s8 = scalar_select 0, %s7, %s5
  loop: start=0, step=1, limit=4
  $region2: #{mlpgin_forward.2} parent=0 // loop_pre_header
    _
  $region3: #{mlpgin_forward.2} parent=0 // loop_header
    %s10 = sphi 0, %s14
    %p11 = scmp.ge.s32.totalorder %s10, 4
    %s17 = sphi 0, %s29
    %s18 = sphi 0, %s25
    %s19 = sphi 0, %s17
    %s20 = sphi 0, %s18
    %s21 = sphi 0, %s19
    %s22 = sphi 0, %s20
    %s34 = sphi 0, %s36
    %s37 = sphi 0, %s34
    %s38 = sphi 0, %s37
    %s54 = sphi 0, %s38
    %s58 = sphi 0, %s58
    %s60 = sphi 0, %s58
    %s61 = sphi 0, %s60
    %s75 = sphi 0, %s61
    %s81 = sphi 0, %s83
    %s84 = sphi 0, %s81
    %s85 = sphi 0, %s84
    %s101 = sphi 0, %s85
    %s107 = sphi 0, %s109
    %s110 = sphi 0, %s107
    %s111 = sphi 0, %s110
    %s127 = sphi 0, %s111
  $region4: #{mlpgin_forward.2} parent=0 // loop_header_branch
    %13 = sbr.rel (%p11) target = $region8
  $region5: #{mlpgin_forward.2} parent=0 // loop_body
    %s15 = ssub.s32 %s10, 1
    %s16 = ssub.s32 %s10, 2
    %s23 = sadd.s32 1, %s18
    %p24 = scmp.ge.s32.totalorder %s23, 1
    %s25 = scalar_select %p24, 0, %s23
    %s26 = sadd.s32 1, %s17
    %s27 = scalar_select %p24, %s26, %s17
    %p28 = scmp.ge.s32.totalorder %s27, 2
    %s29 = scalar_select %p28, 0, %s27
    %s30 = sadd.s32 %s17, %s18
    %s31 = sadd.s32 %s29, %s25
    %s32 = ssub.s32 %s30, %s31
    %p33 = scmp.eq.s32.totalorder %s32, 0
    %s35 = sadd.s32 %s34, 1
    %s36 = scalar_select %p33, %s34, %s35
    %p39 = pneg %p33
    %p40 = scmp.eq.s32.totalorder %s10, 1
    %p41 = por %p39, %p40
    %p42 = scmp.ne.s32.totalorder %s34, %s37
    %p43 = scmp.eq.s32.totalorder %s10, 0
    %p44 = por %p42, %p43
    %p45 = scmp.ne.s32.totalorder %s34, %s37
    %p46 = scmp.eq.s32.totalorder %s15, 1
    %p47 = por %p45, %p46
    %p48 = scmp.ne.s32.totalorder %s37, %s38
    %p49 = scmp.eq.s32.totalorder %s15, 0
    %p50 = por %p48, %p49
    %p51 = scmp.ne.s32.totalorder %s37, %s38
    %p52 = scmp.eq.s32.totalorder %s16, 1
    %p53 = por %p51, %p52
    %p55 = scmp.ne.s32.totalorder %s38, %s54
    %p56 = scmp.eq.s32.totalorder %s16, 0
    %p57 = por %p55, %p56
    %s59 = sadd.s32 %s58, 1
    %p62 = scmp.eq.s32.totalorder %s10, 1
    %p63 = scmp.ne.s32.totalorder %s58, %s60
    %p64 = scmp.eq.s32.totalorder %s10, 0
    %p65 = por %p63, %p64
    %p66 = scmp.ne.s32.totalorder %s58, %s60
    %p67 = scmp.eq.s32.totalorder %s15, 1
    %p68 = por %p66, %p67
    %p69 = scmp.ne.s32.totalorder %s60, %s61
    %p70 = scmp.eq.s32.totalorder %s15, 0
    %p71 = por %p69, %p70
    %p72 = scmp.ne.s32.totalorder %s60, %s61
    %p73 = scmp.eq.s32.totalorder %s16, 1
    %p74 = por %p72, %p73
    %p76 = scmp.ne.s32.totalorder %s61, %s75
    %p77 = scmp.eq.s32.totalorder %s16, 0
    %p78 = por %p76, %p77
    %s79 = ssub.s32 %s17, %s29
    %p80 = scmp.eq.s32.totalorder %s79, 0
    %s82 = sadd.s32 %s81, 1
    %s83 = scalar_select %p80, %s81, %s82
    %p86 = pneg %p80
    %p87 = scmp.eq.s32.totalorder %s10, 1
    %p88 = por %p86, %p87
    %p89 = scmp.ne.s32.totalorder %s81, %s84
    %p90 = scmp.eq.s32.totalorder %s10, 0
    %p91 = por %p89, %p90
    %p92 = scmp.ne.s32.totalorder %s81, %s84
    %p93 = scmp.eq.s32.totalorder %s15, 1
    %p94 = por %p92, %p93
    %p95 = scmp.ne.s32.totalorder %s84, %s85
    %p96 = scmp.eq.s32.totalorder %s15, 0
    %p97 = por %p95, %p96
    %p98 = scmp.ne.s32.totalorder %s84, %s85
    %p99 = scmp.eq.s32.totalorder %s16, 1
    %p100 = por %p98, %p99
    %p102 = scmp.ne.s32.totalorder %s85, %s101
    %p103 = scmp.eq.s32.totalorder %s16, 0
    %p104 = por %p102, %p103
    %s105 = ssub.s32 %s17, %s29
    %p106 = scmp.eq.s32.totalorder %s105, 0
    %s108 = sadd.s32 %s107, 1
    %s109 = scalar_select %p106, %s107, %s108
    %p112 = pneg %p106
    %p113 = scmp.eq.s32.totalorder %s10, 1
    %p114 = por %p112, %p113
    %p115 = scmp.ne.s32.totalorder %s107, %s110
    %p116 = scmp.eq.s32.totalorder %s10, 0
    %p117 = por %p115, %p116
    %p118 = scmp.ne.s32.totalorder %s107, %s110
    %p119 = scmp.eq.s32.totalorder %s15, 1
    %p120 = por %p118, %p119
    %p121 = scmp.ne.s32.totalorder %s110, %s111
    %p122 = scmp.eq.s32.totalorder %s15, 0
    %p123 = por %p121, %p122
    %p124 = scmp.ne.s32.totalorder %s110, %s111
    %p125 = scmp.eq.s32.totalorder %s16, 1
    %p126 = por %p124, %p125
    %p128 = scmp.ne.s32.totalorder %s111, %s127
    %p129 = scmp.eq.s32.totalorder %s16, 0
    %p130 = por %p128, %p129
    %p131 = scmp.le.s32.totalorder 1, %s10
    %p132 = scmp.lt.s32.totalorder %s10, 3
    %p133 = pnand %p131, %p132
    %p134 = pneg %p133
    // Predicated region
    $region9: #{mlpgin_forward.2} parent=5 // pred_check
      _
    $region10: #{mlpgin_forward.2} parent=5 // pred_check_branch
      %136 = sbr.rel (%p133) target = $region12
    $region11: #{mlpgin_forward.2} parent=5 // pred_region
      %s137 = ssub.s32 %s10, 1
      // Predicated region
      $region13: #{mlpgin_forward.2} parent=11 // pred_check
        %p138 = pneg %p71
      $region14: #{mlpgin_forward.2} parent=11 // pred_check_branch
        %140 = sbr.rel (%p138) target = $region16
      $region15: #{mlpgin_forward.2} parent=11 // pred_region
        _
      $region16: #{mlpgin_forward.2} parent=11 // pred_fallthru
        _
    $region12: #{mlpgin_forward.2} parent=5 // pred_fallthru
      _
    %p141 = scmp.lt.s32.totalorder %s10, 2
    // Predicated region
    $region17: #{mlpgin_forward.2} parent=5 // pred_check
      %p142 = pneg %p141
    $region18: #{mlpgin_forward.2} parent=5 // pred_check_branch
      %144 = sbr.rel (%p142) target = $region20
    $region19: #{mlpgin_forward.2} parent=5 // pred_region
      // Predicated region
      $region21: #{mlpgin_forward.2} parent=19 // pred_check
        %p145 = pneg %p44
      $region22: #{mlpgin_forward.2} parent=19 // pred_check_branch
        %147 = sbr.rel (%p145) target = $region24
      $region23: #{mlpgin_forward.2} parent=19 // pred_region
        %s148 = sadd.s32 %s17, %s18
        %s149 = smul.u32 16, %s148
        %p150 = scmp.lt.s32.totalorder %s149, 31
        %s151 = scalar_select %p150, %s149, 31
        %s152 = smul.addr %s151, 8
        %s153 = scalar_lea.vmem %s0, %s152
        %s154 = sadd.s32 %s17, %s18
        %s155 = smul.u32 16, %s154
      $region24: #{mlpgin_forward.2} parent=19 // pred_fallthru
        _
    $region20: #{mlpgin_forward.2} parent=5 // pred_fallthru
      _
    %p156 = scmp.le.s32.totalorder 1, %s10
    %p157 = scmp.lt.s32.totalorder %s10, 3
    %p158 = pnand %p156, %p157
    %p159 = pneg %p158
    // Predicated region
    $region25: #{mlpgin_forward.2} parent=5 // pred_check
      _
    $region26: #{mlpgin_forward.2} parent=5 // pred_check_branch
      %161 = sbr.rel (%p158) target = $region28
    $region27: #{mlpgin_forward.2} parent=5 // pred_region
      %s162 = ssub.s32 %s10, 1
      %s163 = sadd.s32 %s19, %s20
      %s164 = smul.u32 16, %s163
      %p165 = scmp.lt.s32.totalorder %s164, 31
      %s166 = scalar_select %p165, %s164, 31
      %s167 = smul.addr %s166, 8
      %s168 = scalar_lea.vmem %s0, %s167
      %p169 = pneg %p50
      %p170 = pneg %p47
      %p171 = pneg %p71
      %p172 = pneg %p68
      %p173 = pneg %p97
      %p174 = pneg %p94
      %p175 = scmp.lt.s32.totalorder %s19, 1
      %s176 = scalar_select %p175, %s19, 1
      %s177 = scalar_lea.vmem %s2, %s176
      %p178 = pneg %p123
      %p179 = pneg %p120
      %p180 = scmp.lt.s32.totalorder %s19, 1
      %s181 = scalar_select %p180, %s19, 1
      %s182 = scalar_lea.vmem %s3, %s181
      %s183 = sadd.s32 %s19, %s20
      %s184 = smul.u32 16, %s183
      %p185 = scmp.lt.s32.totalorder %s184, 31
      %s186 = scalar_select %p185, %s184, 31
      %s187 = smul.addr %s186, 8
      %s188 = scalar_lea.vmem %s0, %s187
      %s189 = sadd.s32 %s19, %s20
      %s190 = smul.u32 16, %s189
      %p191 = scmp.lt.s32.totalorder %s19, 1
      %s192 = scalar_select %p191, %s19, 1
      %s193 = scalar_lea.vmem %s2, %s192
      %p194 = scmp.lt.s32.totalorder %s19, 1
      %s195 = scalar_select %p194, %s19, 1
      %s196 = scalar_lea.vmem %s3, %s195
      %p197 = scmp.eq.s32.totalorder %s20, 0
      // Predicated region
      $region29: #{mlpgin_forward.2} parent=27 // pred_check
        %p198 = pneg %p197
      $region30: #{mlpgin_forward.2} parent=27 // pred_check_branch
        %200 = sbr.rel (%p198) target = $region32
      $region31: #{mlpgin_forward.2} parent=27 // pred_region
        %201 = vst [vmem:[%s193] sm:$0x1] 0.0
        %202 = vst [vmem:[%s196] sm:$0x1] 0.0
      $region32: #{mlpgin_forward.2} parent=27 // pred_fallthru
        _
      %v203 = vld [vmem:[%s188] sm:$0xff]
      %v204 = vld [vmem:[%s188 + $0x8] sm:$0xff]
      %v205 = vld [vmem:[%s188 + $0x10] sm:$0xff]
      %v206 = vld [vmem:[%s188 + $0x18] sm:$0xff]
      %v207 = vld [vmem:[%s188 + $0x20] sm:$0xff]
      %v208 = vld [vmem:[%s188 + $0x28] sm:$0xff]
      %v209 = vld [vmem:[%s188 + $0x30] sm:$0xff]
      %v210 = vld [vmem:[%s188 + $0x38] sm:$0xff]
      %v211 = vld [vmem:[%s188 + $0x40] sm:$0xff]
      %v212 = vld [vmem:[%s188 + $0x48] sm:$0xff]
      %v213 = vld [vmem:[%s188 + $0x50] sm:$0xff]
      %v214 = vld [vmem:[%s188 + $0x58] sm:$0xff]
      %v215 = vld [vmem:[%s188 + $0x60] sm:$0xff]
      %v216 = vld [vmem:[%s188 + $0x68] sm:$0xff]
      %v217 = vld [vmem:[%s188 + $0x70] sm:$0xff]
      %v218 = vld [vmem:[%s188 + $0x78] sm:$0xff]
      %v219 = vld [vmem:[%s1] sm:$0xff]
      %v220 = vld [vmem:[%s1 + $0x8] sm:$0xff]
      %v221 = vld [vmem:[%s1 + $0x10] sm:$0xff]
      %v222 = vld [vmem:[%s1 + $0x18] sm:$0xff]
      %v223 = vld [vmem:[%s1 + $0x20] sm:$0xff]
      %v224 = vld [vmem:[%s1 + $0x28] sm:$0xff]
      %v225 = vld [vmem:[%s1 + $0x30] sm:$0xff]
      %v226 = vld [vmem:[%s1 + $0x38] sm:$0xff]
      %v227 = vld [vmem:[%s1 + $0x40] sm:$0xff]
      %v228 = vld [vmem:[%s1 + $0x48] sm:$0xff]
      %v229 = vld [vmem:[%s1 + $0x50] sm:$0xff]
      %v230 = vld [vmem:[%s1 + $0x58] sm:$0xff]
      %v231 = vld [vmem:[%s1 + $0x60] sm:$0xff]
      %v232 = vld [vmem:[%s1 + $0x68] sm:$0xff]
      %v233 = vld [vmem:[%s1 + $0x70] sm:$0xff]
      %v234 = vld [vmem:[%s1 + $0x78] sm:$0xff]
      %235 = vmatpush.msra.mxu0 %v234
      %236 = vmatpush.msra.mxu0 %v233
      %237 = vmatpush.msra.mxu0 %v232
      %238 = vmatpush.msra.mxu0 %v231
      %239 = vmatpush.msra.mxu0 %v230
      %240 = vmatpush.msra.mxu0 %v229
      %241 = vmatpush.msra.mxu0 %v228
      %242 = vmatpush.msra.mxu0 %v227
      %243 = vmatpush.msra.mxu0 %v226
      %244 = vmatpush.msra.mxu0 %v225
      %245 = vmatpush.msra.mxu0 %v224
      %246 = vmatpush.msra.mxu0 %v223
      %247 = vmatpush.msra.mxu0 %v222
      %248 = vmatpush.msra.mxu0 %v221
      %249 = vmatpush.msra.mxu0 %v220
      %250 = vmatpush.msra.mxu0 %v219
      %251 = vmatmul.f32.gmra.mxu0 %v203
      %v252 = vpop.f32.mrf.mxu0
      %v253 = vadd.f32 0.0, %v252
      %254 = vmatmul.f32.gmra.mxu0 %v204
      %v255 = vpop.f32.mrf.mxu0
      %v256 = vadd.f32 0.0, %v255
      %257 = vmatmul.f32.gmra.mxu0 %v205
      %v258 = vpop.f32.mrf.mxu0
      %v259 = vadd.f32 0.0, %v258
      %260 = vmatmul.f32.gmra.mxu0 %v206
      %v261 = vpop.f32.mrf.mxu0
      %v262 = vadd.f32 0.0, %v261
      %263 = vmatmul.f32.gmra.mxu0 %v207
      %v264 = vpop.f32.mrf.mxu0
      %v265 = vadd.f32 0.0, %v264
      %266 = vmatmul.f32.gmra.mxu0 %v208
      %v267 = vpop.f32.mrf.mxu0
      %v268 = vadd.f32 0.0, %v267
      %269 = vmatmul.f32.gmra.mxu0 %v209
      %v270 = vpop.f32.mrf.mxu0
      %v271 = vadd.f32 0.0, %v270
      %272 = vmatmul.f32.gmra.mxu0 %v210
      %v273 = vpop.f32.mrf.mxu0
      %v274 = vadd.f32 0.0, %v273
      %275 = vmatmul.f32.gmra.mxu0 %v211
      %v276 = vpop.f32.mrf.mxu0
      %v277 = vadd.f32 0.0, %v276
      %278 = vmatmul.f32.gmra.mxu0 %v212
      %v279 = vpop.f32.mrf.mxu0
      %v280 = vadd.f32 0.0, %v279
      %281 = vmatmul.f32.gmra.mxu0 %v213
      %v282 = vpop.f32.mrf.mxu0
      %v283 = vadd.f32 0.0, %v282
      %284 = vmatmul.f32.gmra.mxu0 %v214
      %v285 = vpop.f32.mrf.mxu0
      %v286 = vadd.f32 0.0, %v285
      %287 = vmatmul.f32.gmra.mxu0 %v215
      %v288 = vpop.f32.mrf.mxu0
      %v289 = vadd.f32 0.0, %v288
      %290 = vmatmul.f32.gmra.mxu0 %v216
      %v291 = vpop.f32.mrf.mxu0
      %v292 = vadd.f32 0.0, %v291
      %293 = vmatmul.f32.gmra.mxu0 %v217
      %v294 = vpop.f32.mrf.mxu0
      %v295 = vadd.f32 0.0, %v294
      %296 = vmatmul.f32.gmra.mxu0 %v218
      %v297 = vpop.f32.mrf.mxu0
      %v298 = vadd.f32 0.0, %v297
      %299 = vdwg.mxu0
      %s300 = sadd.s32 %s19, %s20
      %s301 = smul.u32 %s300, 128
      %s302 = sadd.s32 %s301, 128
      %p303 = scmp.le.s32.totalorder %s302, 200
      // Predicated region
      $region33: #{mlpgin_forward.2} parent=27 // pred_check
        %p304 = pneg %p303
      $region34: #{mlpgin_forward.2} parent=27 // pred_check_branch
        %306 = sbr.rel (%p304) target = $region36
      $region35: #{mlpgin_forward.2} parent=27 // pred_region
        %v307 = vld [vmem:[%s193] sm:$0x1]
        %v308 = vadd.f32 %v253, %v256
        %v309 = vadd.f32 %v308, %v259
        %v310 = vadd.f32 %v309, %v262
        %v311 = vadd.f32 %v310, %v265
        %v312 = vadd.f32 %v311, %v268
        %v313 = vadd.f32 %v312, %v271
        %v314 = vadd.f32 %v313, %v274
        %v315 = vadd.f32 %v314, %v277
        %v316 = vadd.f32 %v315, %v280
        %v317 = vadd.f32 %v316, %v283
        %v318 = vadd.f32 %v317, %v286
        %v319 = vadd.f32 %v318, %v289
        %v320 = vadd.f32 %v319, %v292
        %v321 = vadd.f32 %v320, %v295
        %v322 = vadd.f32 %v321, %v298
        %v323 = vrot.slane %v322, 4
        %v324 = vadd.f32 %v322, %v323
        %v325 = vrot.slane %v324, 2
        %v326 = vadd.f32 %v324, %v325
        %v327 = vrot.slane %v326, 1
        %v328 = vadd.f32 %v326, %v327
        %v329 = vadd.f32 %v307, %v328
        %330 = vst [vmem:[%s193] sm:$0x1] %v329
        %v331 = vld [vmem:[%s196] sm:$0x1]
        %v332 = vmul.f32 %v253, %v253
        %v333 = vmul.f32 %v256, %v256
        %v334 = vmul.f32 %v259, %v259
        %v335 = vmul.f32 %v262, %v262
        %v336 = vmul.f32 %v265, %v265
        %v337 = vmul.f32 %v268, %v268
        %v338 = vmul.f32 %v271, %v271
        %v339 = vmul.f32 %v274, %v274
        %v340 = vmul.f32 %v277, %v277
        %v341 = vmul.f32 %v280, %v280
        %v342 = vmul.f32 %v283, %v283
        %v343 = vmul.f32 %v286, %v286
        %v344 = vmul.f32 %v289, %v289
        %v345 = vmul.f32 %v292, %v292
        %v346 = vmul.f32 %v295, %v295
        %v347 = vmul.f32 %v298, %v298
        %v348 = vadd.f32 %v332, %v333
        %v349 = vadd.f32 %v348, %v334
        %v350 = vadd.f32 %v349, %v335
        %v351 = vadd.f32 %v350, %v336
        %v352 = vadd.f32 %v351, %v337
        %v353 = vadd.f32 %v352, %v338
        %v354 = vadd.f32 %v353, %v339
        %v355 = vadd.f32 %v354, %v340
        %v356 = vadd.f32 %v355, %v341
        %v357 = vadd.f32 %v356, %v342
        %v358 = vadd.f32 %v357, %v343
        %v359 = vadd.f32 %v358, %v344
        %v360 = vadd.f32 %v359, %v345
        %v361 = vadd.f32 %v360, %v346
        %v362 = vadd.f32 %v361, %v347
        %v363 = vrot.slane %v362, 4
        %v364 = vadd.f32 %v362, %v363
        %v365 = vrot.slane %v364, 2
        %v366 = vadd.f32 %v364, %v365
        %v367 = vrot.slane %v366, 1
        %v368 = vadd.f32 %v366, %v367
        %v369 = vadd.f32 %v331, %v368
        %370 = vst [vmem:[%s196] sm:$0x1] %v369
      $region36: #{mlpgin_forward.2} parent=27 // pred_fallthru
        _
      %p371 = scmp.gt.s32.totalorder %s302, 200
      // Predicated region
      $region37: #{mlpgin_forward.2} parent=27 // pred_check
        %p372 = pneg %p371
      $region38: #{mlpgin_forward.2} parent=27 // pred_check_branch
        %374 = sbr.rel (%p372) target = $region40
      $region39: #{mlpgin_forward.2} parent=27 // pred_region
        %v375 = vlaneseq
        %v376 = vshrl.u32 %v375, 7
        %v377 = vadd.s32 %v376, 8
        %v378 = vadd.s32 %v376, 16
        %v379 = vadd.s32 %v376, 24
        %v380 = vadd.s32 %v376, 32
        %v381 = vadd.s32 %v376, 40
        %v382 = vadd.s32 %v376, 48
        %v383 = vadd.s32 %v376, 56
        %v384 = vadd.s32 %v376, 64
        %v385 = vadd.s32 %v376, 72
        %v386 = vadd.s32 %v376, 80
        %v387 = vadd.s32 %v376, 88
        %v388 = vadd.s32 %v376, 96
        %v389 = vadd.s32 %v376, 104
        %v390 = vadd.s32 %v376, 112
        %v391 = vadd.s32 %v376, 120
        %v392 = vstv %s301
        %v393 = vadd.s32 %v376, %v392
        %v394 = vadd.s32 %v377, %v392
        %v395 = vadd.s32 %v378, %v392
        %v396 = vadd.s32 %v379, %v392
        %v397 = vadd.s32 %v380, %v392
        %v398 = vadd.s32 %v381, %v392
        %v399 = vadd.s32 %v382, %v392
        %v400 = vadd.s32 %v383, %v392
        %v401 = vadd.s32 %v384, %v392
        %v402 = vadd.s32 %v385, %v392
        %v403 = vadd.s32 %v386, %v392
        %v404 = vadd.s32 %v387, %v392
        %v405 = vadd.s32 %v388, %v392
        %v406 = vadd.s32 %v389, %v392
        %v407 = vadd.s32 %v390, %v392
        %v408 = vadd.s32 %v391, %v392
        %vm409 = vcmp.lt.s32.totalorder %v393, 200
        %vm410 = vcmp.lt.s32.totalorder %v394, 200
        %vm411 = vcmp.lt.s32.totalorder %v395, 200
        %vm412 = vcmp.lt.s32.totalorder %v396, 200
        %vm413 = vcmp.lt.s32.totalorder %v397, 200
        %vm414 = vcmp.lt.s32.totalorder %v398, 200
        %vm415 = vcmp.lt.s32.totalorder %v399, 200
        %vm416 = vcmp.lt.s32.totalorder %v400, 200
        %vm417 = vcmp.lt.s32.totalorder %v401, 200
        %vm418 = vcmp.lt.s32.totalorder %v402, 200
        %vm419 = vcmp.lt.s32.totalorder %v403, 200
        %vm420 = vcmp.lt.s32.totalorder %v404, 200
        %vm421 = vcmp.lt.s32.totalorder %v405, 200
        %vm422 = vcmp.lt.s32.totalorder %v406, 200
        %vm423 = vcmp.lt.s32.totalorder %v407, 200
        %vm424 = vcmp.lt.s32.totalorder %v408, 200
        %v425 = vsel %vm409, %v253, 0.0
        %v426 = vsel %vm410, %v256, 0.0
        %v427 = vsel %vm411, %v259, 0.0
        %v428 = vsel %vm412, %v262, 0.0
        %v429 = vsel %vm413, %v265, 0.0
        %v430 = vsel %vm414, %v268, 0.0
        %v431 = vsel %vm415, %v271, 0.0
        %v432 = vsel %vm416, %v274, 0.0
        %v433 = vsel %vm417, %v277, 0.0
        %v434 = vsel %vm418, %v280, 0.0
        %v435 = vsel %vm419, %v283, 0.0
        %v436 = vsel %vm420, %v286, 0.0
        %v437 = vsel %vm421, %v289, 0.0
        %v438 = vsel %vm422, %v292, 0.0
        %v439 = vsel %vm423, %v295, 0.0
        %v440 = vsel %vm424, %v298, 0.0
        %v441 = vld [vmem:[%s193] sm:$0x1]
        %v442 = vadd.f32 %v425, %v426
        %v443 = vadd.f32 %v442, %v427
        %v444 = vadd.f32 %v443, %v428
        %v445 = vadd.f32 %v444, %v429
        %v446 = vadd.f32 %v445, %v430
        %v447 = vadd.f32 %v446, %v431
        %v448 = vadd.f32 %v447, %v432
        %v449 = vadd.f32 %v448, %v433
        %v450 = vadd.f32 %v449, %v434
        %v451 = vadd.f32 %v450, %v435
        %v452 = vadd.f32 %v451, %v436
        %v453 = vadd.f32 %v452, %v437
        %v454 = vadd.f32 %v453, %v438
        %v455 = vadd.f32 %v454, %v439
        %v456 = vadd.f32 %v455, %v440
        %v457 = vrot.slane %v456, 4
        %v458 = vadd.f32 %v456, %v457
        %v459 = vrot.slane %v458, 2
        %v460 = vadd.f32 %v458, %v459
        %v461 = vrot.slane %v460, 1
        %v462 = vadd.f32 %v460, %v461
        %v463 = vadd.f32 %v441, %v462
        %464 = vst [vmem:[%s193] sm:$0x1] %v463
        %v465 = vld [vmem:[%s196] sm:$0x1]
        %v466 = vmul.f32 %v425, %v425
        %v467 = vmul.f32 %v426, %v426
        %v468 = vmul.f32 %v427, %v427
        %v469 = vmul.f32 %v428, %v428
        %v470 = vmul.f32 %v429, %v429
        %v471 = vmul.f32 %v430, %v430
        %v472 = vmul.f32 %v431, %v431
        %v473 = vmul.f32 %v432, %v432
        %v474 = vmul.f32 %v433, %v433
        %v475 = vmul.f32 %v434, %v434
        %v476 = vmul.f32 %v435, %v435
        %v477 = vmul.f32 %v436, %v436
        %v478 = vmul.f32 %v437, %v437
        %v479 = vmul.f32 %v438, %v438
        %v480 = vmul.f32 %v439, %v439
        %v481 = vmul.f32 %v440, %v440
        %v482 = vadd.f32 %v466, %v467
        %v483 = vadd.f32 %v482, %v468
        %v484 = vadd.f32 %v483, %v469
        %v485 = vadd.f32 %v484, %v470
        %v486 = vadd.f32 %v485, %v471
        %v487 = vadd.f32 %v486, %v472
        %v488 = vadd.f32 %v487, %v473
        %v489 = vadd.f32 %v488, %v474
        %v490 = vadd.f32 %v489, %v475
        %v491 = vadd.f32 %v490, %v476
        %v492 = vadd.f32 %v491, %v477
        %v493 = vadd.f32 %v492, %v478
        %v494 = vadd.f32 %v493, %v479
        %v495 = vadd.f32 %v494, %v480
        %v496 = vadd.f32 %v495, %v481
        %v497 = vrot.slane %v496, 4
        %v498 = vadd.f32 %v496, %v497
        %v499 = vrot.slane %v498, 2
        %v500 = vadd.f32 %v498, %v499
        %v501 = vrot.slane %v500, 1
        %v502 = vadd.f32 %v500, %v501
        %v503 = vadd.f32 %v465, %v502
        %504 = vst [vmem:[%s196] sm:$0x1] %v503
      $region40: #{mlpgin_forward.2} parent=27 // pred_fallthru
        _
      %p505 = scmp.lt.s32.totalorder %s19, 1
      %s506 = scalar_select %p505, %s19, 1
      %s507 = scalar_lea.vmem %s2, %s506
      %p508 = scmp.lt.s32.totalorder %s19, 1
      %s509 = scalar_select %p508, %s19, 1
      %s510 = scalar_lea.vmem %s3, %s509
      // Predicated region
      $region41: #{mlpgin_forward.2} parent=27 // pred_check
        %p511 = pneg %p94
      $region42: #{mlpgin_forward.2} parent=27 // pred_check_branch
        %513 = sbr.rel (%p511) target = $region44
      $region43: #{mlpgin_forward.2} parent=27 // pred_region
        _
      $region44: #{mlpgin_forward.2} parent=27 // pred_fallthru
        _
      // Predicated region
      $region45: #{mlpgin_forward.2} parent=27 // pred_check
        %p514 = pneg %p120
      $region46: #{mlpgin_forward.2} parent=27 // pred_check_branch
        %516 = sbr.rel (%p514) target = $region48
      $region47: #{mlpgin_forward.2} parent=27 // pred_region
        _
      $region48: #{mlpgin_forward.2} parent=27 // pred_fallthru
        _
    $region28: #{mlpgin_forward.2} parent=5 // pred_fallthru
      _
    %p517 = scmp.le.s32.totalorder 2, %s10
    // Predicated region
    $region49: #{mlpgin_forward.2} parent=5 // pred_check
      %p518 = pneg %p517
    $region50: #{mlpgin_forward.2} parent=5 // pred_check_branch
      %520 = sbr.rel (%p518) target = $region52
    $region51: #{mlpgin_forward.2} parent=5 // pred_region
      %s521 = ssub.s32 %s10, 2
      // Predicated region
      $region53: #{mlpgin_forward.2} parent=51 // pred_check
        %p522 = pneg %p100
      $region54: #{mlpgin_forward.2} parent=51 // pred_check_branch
        %524 = sbr.rel (%p522) target = $region56
      $region55: #{mlpgin_forward.2} parent=51 // pred_region
        %p525 = scmp.lt.s32.totalorder %s21, 1
        %s526 = scalar_select %p525, %s21, 1
        %s527 = scalar_lea.vmem %s2, %s526
      $region56: #{mlpgin_forward.2} parent=51 // pred_fallthru
        _
      // Predicated region
      $region57: #{mlpgin_forward.2} parent=51 // pred_check
        %p528 = pneg %p126
      $region58: #{mlpgin_forward.2} parent=51 // pred_check_branch
        %530 = sbr.rel (%p528) target = $region60
      $region59: #{mlpgin_forward.2} parent=51 // pred_region
        %p531 = scmp.lt.s32.totalorder %s21, 1
        %s532 = scalar_select %p531, %s21, 1
        %s533 = scalar_lea.vmem %s3, %s532
      $region60: #{mlpgin_forward.2} parent=51 // pred_fallthru
        _
    $region52: #{mlpgin_forward.2} parent=5 // pred_fallthru
      _
  $region6: #{mlpgin_forward.2} parent=0 // loop_footer
    %s14 = sadd.s32 1, %s10
  $region7: #{mlpgin_forward.2} parent=0 // loop_footer_branch
    %9 = sbr.rel target = $region3
  $region8: #{mlpgin_forward.2} parent=0 // loop_exit
    _

// kernel: mlpgin_forward.3
$region0: #{mlpgin_forward.3}
  #allocation0 [shape = 'u32[]', space=smem, size = 0x4, offset = 0x4, fixed_abs, tag = 'smem constant byte address 0x4 - core index']
  #allocation1 [shape = 'u32[72,128]{1,0:T(1,128)}', space=vmem, size = 0x9000, scoped, tag = 'internal scratch']
  %s0 = inlined_call_operand.vmem [shape: f32[256,128], index: 0, kind: input, shape index: {}]
  %s1 = inlined_call_operand.vmem [shape: f32[128,128], index: 1, kind: input, shape index: {}]
  %s2 = inlined_call_operand.vmem [shape: f32[1,128], index: 2, kind: input, shape index: {}]
  %s3 = inlined_call_operand.vmem [shape: f32[1,128], index: 3, kind: input, shape index: {}]
  %s4 = inlined_call_operand.vmem [shape: f32[128,128], index: 4, kind: input, shape index: {}]
  %s5 = inlined_call_operand.vmem [shape: f32[1,128], index: 5, kind: input, shape index: {}]
  %s6 = inlined_call_operand.vmem [shape: f32[256,128], index: 6, kind: output, shape index: {}]
  %s7 = sld [smem:[#allocation0]]
  $region57: #{mlpgin_forward.3} parent=0
    _
  %s9 = ssub.s32 1, %s7
  %s10 = scalar_select 0, %s9, %s7
  loop: start=0, step=1, limit=4
  $region2: #{mlpgin_forward.3} parent=0 // loop_pre_header
    _
  $region3: #{mlpgin_forward.3} parent=0 // loop_header
    %s12 = sphi 0, %s16
    %p13 = scmp.ge.s32.totalorder %s12, 4
    %s22 = sphi 0, %s24
    %s25 = sphi 0, %s22
    %s26 = sphi 0, %s25
    %s42 = sphi 0, %s26
    %s46 = sphi 0, %s46
    %s48 = sphi 0, %s46
    %s49 = sphi 0, %s48
    %s63 = sphi 0, %s49
    %s67 = sphi 0, %s67
    %s69 = sphi 0, %s67
    %s70 = sphi 0, %s69
    %s84 = sphi 0, %s70
    %s88 = sphi 0, %s88
    %s90 = sphi 0, %s88
    %s91 = sphi 0, %s90
    %s105 = sphi 0, %s91
    %s109 = sphi 0, %s109
    %s111 = sphi 0, %s109
    %s112 = sphi 0, %s111
    %s126 = sphi 0, %s112
    %s130 = sphi 0, %s130
    %s132 = sphi 0, %s130
    %s133 = sphi 0, %s132
    %s147 = sphi 0, %s133
    %s153 = sphi 0, %s155
    %s156 = sphi 0, %s153
    %s157 = sphi 0, %s156
    %s173 = sphi 0, %s157
  $region4: #{mlpgin_forward.3} parent=0 // loop_header_branch
    %15 = sbr.rel (%p13) target = $region8
  $region5: #{mlpgin_forward.3} parent=0 // loop_body
    %s17 = ssub.s32 %s12, 1
    %s18 = ssub.s32 %s12, 2
    %s19 = sadd.s32 %s12, 1
    %s20 = ssub.s32 %s12, %s19
    %p21 = scmp.eq.s32.totalorder %s20, 0
    %s23 = sadd.s32 %s22, 1
    %s24 = scalar_select %p21, %s22, %s23
    %p27 = pneg %p21
    %p28 = scmp.eq.s32.totalorder %s12, 1
    %p29 = por %p27, %p28
    %p30 = scmp.ne.s32.totalorder %s22, %s25
    %p31 = scmp.eq.s32.totalorder %s12, 0
    %p32 = por %p30, %p31
    %p33 = scmp.ne.s32.totalorder %s22, %s25
    %p34 = scmp.eq.s32.totalorder %s17, 1
    %p35 = por %p33, %p34
    %p36 = scmp.ne.s32.totalorder %s25, %s26
    %p37 = scmp.eq.s32.totalorder %s17, 0
    %p38 = por %p36, %p37
    %p39 = scmp.ne.s32.totalorder %s25, %s26
    %p40 = scmp.eq.s32.totalorder %s18, 1
    %p41 = por %p39, %p40
    %p43 = scmp.ne.s32.totalorder %s26, %s42
    %p44 = scmp.eq.s32.totalorder %s18, 0
    %p45 = por %p43, %p44
    %s47 = sadd.s32 %s46, 1
    %p50 = scmp.eq.s32.totalorder %s12, 1
    %p51 = scmp.ne.s32.totalorder %s46, %s48
    %p52 = scmp.eq.s32.totalorder %s12, 0
    %p53 = por %p51, %p52
    %p54 = scmp.ne.s32.totalorder %s46, %s48
    %p55 = scmp.eq.s32.totalorder %s17, 1
    %p56 = por %p54, %p55
    %p57 = scmp.ne.s32.totalorder %s48, %s49
    %p58 = scmp.eq.s32.totalorder %s17, 0
    %p59 = por %p57, %p58
    %p60 = scmp.ne.s32.totalorder %s48, %s49
    %p61 = scmp.eq.s32.totalorder %s18, 1
    %p62 = por %p60, %p61
    %p64 = scmp.ne.s32.totalorder %s49, %s63
    %p65 = scmp.eq.s32.totalorder %s18, 0
    %p66 = por %p64, %p65
    %s68 = sadd.s32 %s67, 1
    %p71 = scmp.eq.s32.totalorder %s12, 1
    %p72 = scmp.ne.s32.totalorder %s67, %s69
    %p73 = scmp.eq.s32.totalorder %s12, 0
    %p74 = por %p72, %p73
    %p75 = scmp.ne.s32.totalorder %s67, %s69
    %p76 = scmp.eq.s32.totalorder %s17, 1
    %p77 = por %p75, %p76
    %p78 = scmp.ne.s32.totalorder %s69, %s70
    %p79 = scmp.eq.s32.totalorder %s17, 0
    %p80 = por %p78, %p79
    %p81 = scmp.ne.s32.totalorder %s69, %s70
    %p82 = scmp.eq.s32.totalorder %s18, 1
    %p83 = por %p81, %p82
    %p85 = scmp.ne.s32.totalorder %s70, %s84
    %p86 = scmp.eq.s32.totalorder %s18, 0
    %p87 = por %p85, %p86
    %s89 = sadd.s32 %s88, 1
    %p92 = scmp.eq.s32.totalorder %s12, 1
    %p93 = scmp.ne.s32.totalorder %s88, %s90
    %p94 = scmp.eq.s32.totalorder %s12, 0
    %p95 = por %p93, %p94
    %p96 = scmp.ne.s32.totalorder %s88, %s90
    %p97 = scmp.eq.s32.totalorder %s17, 1
    %p98 = por %p96, %p97
    %p99 = scmp.ne.s32.totalorder %s90, %s91
    %p100 = scmp.eq.s32.totalorder %s17, 0
    %p101 = por %p99, %p100
    %p102 = scmp.ne.s32.totalorder %s90, %s91
    %p103 = scmp.eq.s32.totalorder %s18, 1
    %p104 = por %p102, %p103
    %p106 = scmp.ne.s32.totalorder %s91, %s105
    %p107 = scmp.eq.s32.totalorder %s18, 0
    %p108 = por %p106, %p107
    %s110 = sadd.s32 %s109, 1
    %p113 = scmp.eq.s32.totalorder %s12, 1
    %p114 = scmp.ne.s32.totalorder %s109, %s111
    %p115 = scmp.eq.s32.totalorder %s12, 0
    %p116 = por %p114, %p115
    %p117 = scmp.ne.s32.totalorder %s109, %s111
    %p118 = scmp.eq.s32.totalorder %s17, 1
    %p119 = por %p117, %p118
    %p120 = scmp.ne.s32.totalorder %s111, %s112
    %p121 = scmp.eq.s32.totalorder %s17, 0
    %p122 = por %p120, %p121
    %p123 = scmp.ne.s32.totalorder %s111, %s112
    %p124 = scmp.eq.s32.totalorder %s18, 1
    %p125 = por %p123, %p124
    %p127 = scmp.ne.s32.totalorder %s112, %s126
    %p128 = scmp.eq.s32.totalorder %s18, 0
    %p129 = por %p127, %p128
    %s131 = sadd.s32 %s130, 1
    %p134 = scmp.eq.s32.totalorder %s12, 1
    %p135 = scmp.ne.s32.totalorder %s130, %s132
    %p136 = scmp.eq.s32.totalorder %s12, 0
    %p137 = por %p135, %p136
    %p138 = scmp.ne.s32.totalorder %s130, %s132
    %p139 = scmp.eq.s32.totalorder %s17, 1
    %p140 = por %p138, %p139
    %p141 = scmp.ne.s32.totalorder %s132, %s133
    %p142 = scmp.eq.s32.totalorder %s17, 0
    %p143 = por %p141, %p142
    %p144 = scmp.ne.s32.totalorder %s132, %s133
    %p145 = scmp.eq.s32.totalorder %s18, 1
    %p146 = por %p144, %p145
    %p148 = scmp.ne.s32.totalorder %s133, %s147
    %p149 = scmp.eq.s32.totalorder %s18, 0
    %p150 = por %p148, %p149
    %s151 = ssub.s32 %s12, %s19
    %p152 = scmp.eq.s32.totalorder %s151, 0
    %s154 = sadd.s32 %s153, 1
    %s155 = scalar_select %p152, %s153, %s154
    %p158 = pneg %p152
    %p159 = scmp.eq.s32.totalorder %s12, 1
    %p160 = por %p158, %p159
    %p161 = scmp.ne.s32.totalorder %s153, %s156
    %p162 = scmp.eq.s32.totalorder %s12, 0
    %p163 = por %p161, %p162
    %p164 = scmp.ne.s32.totalorder %s153, %s156
    %p165 = scmp.eq.s32.totalorder %s17, 1
    %p166 = por %p164, %p165
    %p167 = scmp.ne.s32.totalorder %s156, %s157
    %p168 = scmp.eq.s32.totalorder %s17, 0
    %p169 = por %p167, %p168
    %p170 = scmp.ne.s32.totalorder %s156, %s157
    %p171 = scmp.eq.s32.totalorder %s18, 1
    %p172 = por %p170, %p171
    %p174 = scmp.ne.s32.totalorder %s157, %s173
    %p175 = scmp.eq.s32.totalorder %s18, 0
    %p176 = por %p174, %p175
    %p177 = scmp.le.s32.totalorder 1, %s12
    %p178 = scmp.lt.s32.totalorder %s12, 3
    %p179 = pnand %p177, %p178
    %p180 = pneg %p179
    // Predicated region
    $region9: #{mlpgin_forward.3} parent=5 // pred_check
      _
    $region10: #{mlpgin_forward.3} parent=5 // pred_check_branch
      %182 = sbr.rel (%p179) target = $region12
    $region11: #{mlpgin_forward.3} parent=5 // pred_region
      %s183 = ssub.s32 %s12, 1
      // Predicated region
      $region13: #{mlpgin_forward.3} parent=11 // pred_check
        %p184 = pneg %p59
      $region14: #{mlpgin_forward.3} parent=11 // pred_check_branch
        %186 = sbr.rel (%p184) target = $region16
      $region15: #{mlpgin_forward.3} parent=11 // pred_region
        _
      $region16: #{mlpgin_forward.3} parent=11 // pred_fallthru
        _
      // Predicated region
      $region17: #{mlpgin_forward.3} parent=11 // pred_check
        %p187 = pneg %p80
      $region18: #{mlpgin_forward.3} parent=11 // pred_check_branch
        %189 = sbr.rel (%p187) target = $region20
      $region19: #{mlpgin_forward.3} parent=11 // pred_region
        _
      $region20: #{mlpgin_forward.3} parent=11 // pred_fallthru
        _
      // Predicated region
      $region21: #{mlpgin_forward.3} parent=11 // pred_check
        %p190 = pneg %p101
      $region22: #{mlpgin_forward.3} parent=11 // pred_check_branch
        %192 = sbr.rel (%p190) target = $region24
      $region23: #{mlpgin_forward.3} parent=11 // pred_region
        _
      $region24: #{mlpgin_forward.3} parent=11 // pred_fallthru
        _
      // Predicated region
      $region25: #{mlpgin_forward.3} parent=11 // pred_check
        %p193 = pneg %p122
      $region26: #{mlpgin_forward.3} parent=11 // pred_check_branch
        %195 = sbr.rel (%p193) target = $region28
      $region27: #{mlpgin_forward.3} parent=11 // pred_region
        _
      $region28: #{mlpgin_forward.3} parent=11 // pred_fallthru
        _
      // Predicated region
      $region29: #{mlpgin_forward.3} parent=11 // pred_check
        %p196 = pneg %p143
      $region30: #{mlpgin_forward.3} parent=11 // pred_check_branch
        %198 = sbr.rel (%p196) target = $region32
      $region31: #{mlpgin_forward.3} parent=11 // pred_region
        _
      $region32: #{mlpgin_forward.3} parent=11 // pred_fallthru
        _
    $region12: #{mlpgin_forward.3} parent=5 // pred_fallthru
      _
    %p199 = scmp.lt.s32.totalorder %s12, 2
    // Predicated region
    $region33: #{mlpgin_forward.3} parent=5 // pred_check
      %p200 = pneg %p199
    $region34: #{mlpgin_forward.3} parent=5 // pred_check_branch
      %202 = sbr.rel (%p200) target = $region36
    $region35: #{mlpgin_forward.3} parent=5 // pred_region
      // Predicated region
      $region37: #{mlpgin_forward.3} parent=35 // pred_check
        %p203 = pneg %p32
      $region38: #{mlpgin_forward.3} parent=35 // pred_check_branch
        %205 = sbr.rel (%p203) target = $region40
      $region39: #{mlpgin_forward.3} parent=35 // pred_region
        %s206 = smul.u32 16, %s12
        %p207 = scmp.lt.s32.totalorder %s206, 31
        %s208 = scalar_select %p207, %s206, 31
        %s209 = smul.addr %s208, 8
        %s210 = scalar_lea.vmem %s0, %s209
        %s211 = smul.u32 16, %s12
      $region40: #{mlpgin_forward.3} parent=35 // pred_fallthru
        _
    $region36: #{mlpgin_forward.3} parent=5 // pred_fallthru
      _
    %p212 = scmp.le.s32.totalorder 1, %s12
    %p213 = scmp.lt.s32.totalorder %s12, 3
    %p214 = pnand %p212, %p213
    %p215 = pneg %p214
    // Predicated region
    $region41: #{mlpgin_forward.3} parent=5 // pred_check
      _
    $region42: #{mlpgin_forward.3} parent=5 // pred_check_branch
      %217 = sbr.rel (%p214) target = $region44
    $region43: #{mlpgin_forward.3} parent=5 // pred_region
      %s218 = ssub.s32 %s12, 1
      %s219 = smul.u32 16, %s17
      %p220 = scmp.lt.s32.totalorder %s219, 31
      %s221 = scalar_select %p220, %s219, 31
      %s222 = smul.addr %s221, 8
      %s223 = scalar_lea.vmem %s0, %s222
      %p224 = pneg %p38
      %p225 = pneg %p35
      %p226 = pneg %p59
      %p227 = pneg %p56
      %p228 = pneg %p80
      %p229 = pneg %p77
      %p230 = pneg %p101
      %p231 = pneg %p98
      %p232 = pneg %p122
      %p233 = pneg %p119
      %p234 = pneg %p143
      %p235 = pneg %p140
      %p236 = pneg %p169
      %p237 = pneg %p166
      %s238 = smul.u32 16, %s17
      %p239 = scmp.lt.s32.totalorder %s238, 31
      %s240 = scalar_select %p239, %s238, 31
      %s241 = smul.addr %s240, 8
      %s242 = scalar_lea.vmem %s6, %s241
      %s243 = smul.u32 16, %s17
      %p244 = scmp.lt.s32.totalorder %s243, 31
      %s245 = scalar_select %p244, %s243, 31
      %s246 = smul.addr %s245, 8
      %s247 = scalar_lea.vmem %s0, %s246
      %s248 = smul.u32 16, %s17
      %s249 = smul.u32 16, %s17
      %p250 = scmp.lt.s32.totalorder %s249, 31
      %s251 = scalar_select %p250, %s249, 31
      %s252 = smul.addr %s251, 8
      %s253 = scalar_lea.vmem %s6, %s252
      %s254 = smul.u32 16, %s17
      %v255 = vld [vmem:[%s247] sm:$0xff]
      %v256 = vld [vmem:[%s247 + $0x8] sm:$0xff]
      %v257 = vld [vmem:[%s247 + $0x10] sm:$0xff]
      %v258 = vld [vmem:[%s247 + $0x18] sm:$0xff]
      %v259 = vld [vmem:[%s247 + $0x20] sm:$0xff]
      %v260 = vld [vmem:[%s247 + $0x28] sm:$0xff]
      %v261 = vld [vmem:[%s247 + $0x30] sm:$0xff]
      %v262 = vld [vmem:[%s247 + $0x38] sm:$0xff]
      %v263 = vld [vmem:[%s247 + $0x40] sm:$0xff]
      %v264 = vld [vmem:[%s247 + $0x48] sm:$0xff]
      %v265 = vld [vmem:[%s247 + $0x50] sm:$0xff]
      %v266 = vld [vmem:[%s247 + $0x58] sm:$0xff]
      %v267 = vld [vmem:[%s247 + $0x60] sm:$0xff]
      %v268 = vld [vmem:[%s247 + $0x68] sm:$0xff]
      %v269 = vld [vmem:[%s247 + $0x70] sm:$0xff]
      %v270 = vld [vmem:[%s247 + $0x78] sm:$0xff]
      %v271 = vld [vmem:[%s1] sm:$0xff]
      %v272 = vld [vmem:[%s1 + $0x8] sm:$0xff]
      %v273 = vld [vmem:[%s1 + $0x10] sm:$0xff]
      %v274 = vld [vmem:[%s1 + $0x18] sm:$0xff]
      %v275 = vld [vmem:[%s1 + $0x20] sm:$0xff]
      %v276 = vld [vmem:[%s1 + $0x28] sm:$0xff]
      %v277 = vld [vmem:[%s1 + $0x30] sm:$0xff]
      %v278 = vld [vmem:[%s1 + $0x38] sm:$0xff]
      %v279 = vld [vmem:[%s1 + $0x40] sm:$0xff]
      %v280 = vld [vmem:[%s1 + $0x48] sm:$0xff]
      %v281 = vld [vmem:[%s1 + $0x50] sm:$0xff]
      %v282 = vld [vmem:[%s1 + $0x58] sm:$0xff]
      %v283 = vld [vmem:[%s1 + $0x60] sm:$0xff]
      %v284 = vld [vmem:[%s1 + $0x68] sm:$0xff]
      %v285 = vld [vmem:[%s1 + $0x70] sm:$0xff]
      %v286 = vld [vmem:[%s1 + $0x78] sm:$0xff]
      %287 = vmatpush.msra.mxu0 %v286
      %288 = vmatpush.msra.mxu0 %v285
      %289 = vmatpush.msra.mxu0 %v284
      %290 = vmatpush.msra.mxu0 %v283
      %291 = vmatpush.msra.mxu0 %v282
      %292 = vmatpush.msra.mxu0 %v281
      %293 = vmatpush.msra.mxu0 %v280
      %294 = vmatpush.msra.mxu0 %v279
      %295 = vmatpush.msra.mxu0 %v278
      %296 = vmatpush.msra.mxu0 %v277
      %297 = vmatpush.msra.mxu0 %v276
      %298 = vmatpush.msra.mxu0 %v275
      %299 = vmatpush.msra.mxu0 %v274
      %300 = vmatpush.msra.mxu0 %v273
      %301 = vmatpush.msra.mxu0 %v272
      %302 = vmatpush.msra.mxu0 %v271
      %303 = vmatmul.f32.gmra.mxu0 %v255
      %v304 = vpop.f32.mrf.mxu0
      %v305 = vadd.f32 0.0, %v304
      %306 = vmatmul.f32.gmra.mxu0 %v256
      %v307 = vpop.f32.mrf.mxu0
      %v308 = vadd.f32 0.0, %v307
      %309 = vmatmul.f32.gmra.mxu0 %v257
      %v310 = vpop.f32.mrf.mxu0
      %v311 = vadd.f32 0.0, %v310
      %312 = vmatmul.f32.gmra.mxu0 %v258
      %v313 = vpop.f32.mrf.mxu0
      %v314 = vadd.f32 0.0, %v313
      %315 = vmatmul.f32.gmra.mxu0 %v259
      %v316 = vpop.f32.mrf.mxu0
      %v317 = vadd.f32 0.0, %v316
      %318 = vmatmul.f32.gmra.mxu0 %v260
      %v319 = vpop.f32.mrf.mxu0
      %v320 = vadd.f32 0.0, %v319
      %321 = vmatmul.f32.gmra.mxu0 %v261
      %v322 = vpop.f32.mrf.mxu0
      %v323 = vadd.f32 0.0, %v322
      %324 = vmatmul.f32.gmra.mxu0 %v262
      %v325 = vpop.f32.mrf.mxu0
      %v326 = vadd.f32 0.0, %v325
      %327 = vmatmul.f32.gmra.mxu0 %v263
      %v328 = vpop.f32.mrf.mxu0
      %v329 = vadd.f32 0.0, %v328
      %330 = vmatmul.f32.gmra.mxu0 %v264
      %v331 = vpop.f32.mrf.mxu0
      %v332 = vadd.f32 0.0, %v331
      %333 = vmatmul.f32.gmra.mxu0 %v265
      %v334 = vpop.f32.mrf.mxu0
      %v335 = vadd.f32 0.0, %v334
      %336 = vmatmul.f32.gmra.mxu0 %v266
      %v337 = vpop.f32.mrf.mxu0
      %v338 = vadd.f32 0.0, %v337
      %339 = vmatmul.f32.gmra.mxu0 %v267
      %v340 = vpop.f32.mrf.mxu0
      %v341 = vadd.f32 0.0, %v340
      %342 = vmatmul.f32.gmra.mxu0 %v268
      %v343 = vpop.f32.mrf.mxu0
      %v344 = vadd.f32 0.0, %v343
      %345 = vmatmul.f32.gmra.mxu0 %v269
      %v346 = vpop.f32.mrf.mxu0
      %v347 = vadd.f32 0.0, %v346
      %348 = vmatmul.f32.gmra.mxu0 %v270
      %v349 = vpop.f32.mrf.mxu0
      %v350 = vadd.f32 0.0, %v349
      %351 = vdwg.mxu0
      %v352 = vld [vmem:[%s2] sm:$0x1]
      %v354 = vperm.slane %v352, 0
      %v356 = vmul.f32 %v305, %v354
      %v357 = vmul.f32 %v308, %v354
      %v358 = vmul.f32 %v311, %v354
      %v359 = vmul.f32 %v314, %v354
      %v360 = vmul.f32 %v317, %v354
      %v361 = vmul.f32 %v320, %v354
      %v362 = vmul.f32 %v323, %v354
      %v363 = vmul.f32 %v326, %v354
      %v364 = vmul.f32 %v329, %v354
      %v365 = vmul.f32 %v332, %v354
      %v366 = vmul.f32 %v335, %v354
      %v367 = vmul.f32 %v338, %v354
      %v368 = vmul.f32 %v341, %v354
      %v369 = vmul.f32 %v344, %v354
      %v370 = vmul.f32 %v347, %v354
      %v371 = vmul.f32 %v350, %v354
      %v372 = vld [vmem:[%s3] sm:$0x1]
      %v374 = vperm.slane %v372, 0
      %v376 = vadd.f32 %v356, %v374
      %v377 = vadd.f32 %v357, %v374
      %v378 = vadd.f32 %v358, %v374
      %v379 = vadd.f32 %v359, %v374
      %v380 = vadd.f32 %v360, %v374
      %v381 = vadd.f32 %v361, %v374
      %v382 = vadd.f32 %v362, %v374
      %v383 = vadd.f32 %v363, %v374
      %v384 = vadd.f32 %v364, %v374
      %v385 = vadd.f32 %v365, %v374
      %v386 = vadd.f32 %v366, %v374
      %v387 = vadd.f32 %v367, %v374
      %v388 = vadd.f32 %v368, %v374
      %v389 = vadd.f32 %v369, %v374
      %v390 = vadd.f32 %v370, %v374
      %v391 = vadd.f32 %v371, %v374
      %v392 = vmax.f32 %v376, 0.0
      %v393 = vmax.f32 %v377, 0.0
      %v394 = vmax.f32 %v378, 0.0
      %v395 = vmax.f32 %v379, 0.0
      %v396 = vmax.f32 %v380, 0.0
      %v397 = vmax.f32 %v381, 0.0
      %v398 = vmax.f32 %v382, 0.0
      %v399 = vmax.f32 %v383, 0.0
      %v400 = vmax.f32 %v384, 0.0
      %v401 = vmax.f32 %v385, 0.0
      %v402 = vmax.f32 %v386, 0.0
      %v403 = vmax.f32 %v387, 0.0
      %v404 = vmax.f32 %v388, 0.0
      %v405 = vmax.f32 %v389, 0.0
      %v406 = vmax.f32 %v390, 0.0
      %v407 = vmax.f32 %v391, 0.0
      %v408 = vld [vmem:[%s4] sm:$0xff]
      %v409 = vld [vmem:[%s4 + $0x8] sm:$0xff]
      %v410 = vld [vmem:[%s4 + $0x10] sm:$0xff]
      %v411 = vld [vmem:[%s4 + $0x18] sm:$0xff]
      %v412 = vld [vmem:[%s4 + $0x20] sm:$0xff]
      %v413 = vld [vmem:[%s4 + $0x28] sm:$0xff]
      %v414 = vld [vmem:[%s4 + $0x30] sm:$0xff]
      %v415 = vld [vmem:[%s4 + $0x38] sm:$0xff]
      %v416 = vld [vmem:[%s4 + $0x40] sm:$0xff]
      %v417 = vld [vmem:[%s4 + $0x48] sm:$0xff]
      %v418 = vld [vmem:[%s4 + $0x50] sm:$0xff]
      %v419 = vld [vmem:[%s4 + $0x58] sm:$0xff]
      %v420 = vld [vmem:[%s4 + $0x60] sm:$0xff]
      %v421 = vld [vmem:[%s4 + $0x68] sm:$0xff]
      %v422 = vld [vmem:[%s4 + $0x70] sm:$0xff]
      %v423 = vld [vmem:[%s4 + $0x78] sm:$0xff]
      %v424 = vld [vmem:[%s5] sm:$0x1]
      %v426 = vperm.slane %v424, 0
      %428 = vmatpush.msra.mxu0 %v423
      %429 = vmatpush.msra.mxu0 %v422
      %430 = vmatpush.msra.mxu0 %v421
      %431 = vmatpush.msra.mxu0 %v420
      %432 = vmatpush.msra.mxu0 %v419
      %433 = vmatpush.msra.mxu0 %v418
      %434 = vmatpush.msra.mxu0 %v417
      %435 = vmatpush.msra.mxu0 %v416
      %436 = vmatpush.msra.mxu0 %v415
      %437 = vmatpush.msra.mxu0 %v414
      %438 = vmatpush.msra.mxu0 %v413
      %439 = vmatpush.msra.mxu0 %v412
      %440 = vmatpush.msra.mxu0 %v411
      %441 = vmatpush.msra.mxu0 %v410
      %442 = vmatpush.msra.mxu0 %v409
      %443 = vmatpush.msra.mxu0 %v408
      %444 = vmatmul.f32.gmra.mxu0 %v392
      %v445 = vpop.f32.mrf.mxu0
      %v446 = vadd.f32 %v426, %v445
      %447 = vmatmul.f32.gmra.mxu0 %v393
      %v448 = vpop.f32.mrf.mxu0
      %v449 = vadd.f32 %v426, %v448
      %450 = vmatmul.f32.gmra.mxu0 %v394
      %v451 = vpop.f32.mrf.mxu0
      %v452 = vadd.f32 %v426, %v451
      %453 = vmatmul.f32.gmra.mxu0 %v395
      %v454 = vpop.f32.mrf.mxu0
      %v455 = vadd.f32 %v426, %v454
      %456 = vmatmul.f32.gmra.mxu0 %v396
      %v457 = vpop.f32.mrf.mxu0
      %v458 = vadd.f32 %v426, %v457
      %459 = vmatmul.f32.gmra.mxu0 %v397
      %v460 = vpop.f32.mrf.mxu0
      %v461 = vadd.f32 %v426, %v460
      %462 = vmatmul.f32.gmra.mxu0 %v398
      %v463 = vpop.f32.mrf.mxu0
      %v464 = vadd.f32 %v426, %v463
      %465 = vmatmul.f32.gmra.mxu0 %v399
      %v466 = vpop.f32.mrf.mxu0
      %v467 = vadd.f32 %v426, %v466
      %468 = vmatmul.f32.gmra.mxu0 %v400
      %v469 = vpop.f32.mrf.mxu0
      %v470 = vadd.f32 %v426, %v469
      %471 = vmatmul.f32.gmra.mxu0 %v401
      %v472 = vpop.f32.mrf.mxu0
      %v473 = vadd.f32 %v426, %v472
      %474 = vmatmul.f32.gmra.mxu0 %v402
      %v475 = vpop.f32.mrf.mxu0
      %v476 = vadd.f32 %v426, %v475
      %477 = vmatmul.f32.gmra.mxu0 %v403
      %v478 = vpop.f32.mrf.mxu0
      %v479 = vadd.f32 %v426, %v478
      %480 = vmatmul.f32.gmra.mxu0 %v404
      %v481 = vpop.f32.mrf.mxu0
      %v482 = vadd.f32 %v426, %v481
      %483 = vmatmul.f32.gmra.mxu0 %v405
      %v484 = vpop.f32.mrf.mxu0
      %v485 = vadd.f32 %v426, %v484
      %486 = vmatmul.f32.gmra.mxu0 %v406
      %v487 = vpop.f32.mrf.mxu0
      %v488 = vadd.f32 %v426, %v487
      %489 = vmatmul.f32.gmra.mxu0 %v407
      %v490 = vpop.f32.mrf.mxu0
      %v491 = vadd.f32 %v426, %v490
      %492 = vdwg.mxu0
      %493 = vst [vmem:[%s253] sm:$0xff] %v446
      %494 = vst [vmem:[%s253 + $0x8] sm:$0xff] %v449
      %495 = vst [vmem:[%s253 + $0x10] sm:$0xff] %v452
      %496 = vst [vmem:[%s253 + $0x18] sm:$0xff] %v455
      %497 = vst [vmem:[%s253 + $0x20] sm:$0xff] %v458
      %498 = vst [vmem:[%s253 + $0x28] sm:$0xff] %v461
      %499 = vst [vmem:[%s253 + $0x30] sm:$0xff] %v464
      %500 = vst [vmem:[%s253 + $0x38] sm:$0xff] %v467
      %501 = vst [vmem:[%s253 + $0x40] sm:$0xff] %v470
      %502 = vst [vmem:[%s253 + $0x48] sm:$0xff] %v473
      %503 = vst [vmem:[%s253 + $0x50] sm:$0xff] %v476
      %504 = vst [vmem:[%s253 + $0x58] sm:$0xff] %v479
      %505 = vst [vmem:[%s253 + $0x60] sm:$0xff] %v482
      %506 = vst [vmem:[%s253 + $0x68] sm:$0xff] %v485
      %507 = vst [vmem:[%s253 + $0x70] sm:$0xff] %v488
      %508 = vst [vmem:[%s253 + $0x78] sm:$0xff] %v491
      %s509 = smul.u32 16, %s17
      %p510 = scmp.lt.s32.totalorder %s509, 31
      %s511 = scalar_select %p510, %s509, 31
      %s512 = smul.addr %s511, 8
      %s513 = scalar_lea.vmem %s6, %s512
      // Predicated region
      $region45: #{mlpgin_forward.3} parent=43 // pred_check
        %p514 = pneg %p166
      $region46: #{mlpgin_forward.3} parent=43 // pred_check_branch
        %516 = sbr.rel (%p514) target = $region48
      $region47: #{mlpgin_forward.3} parent=43 // pred_region
        %s517 = smul.u32 16, %s17
      $region48: #{mlpgin_forward.3} parent=43 // pred_fallthru
        _
    $region44: #{mlpgin_forward.3} parent=5 // pred_fallthru
      _
    %p518 = scmp.le.s32.totalorder 2, %s12
    // Predicated region
    $region49: #{mlpgin_forward.3} parent=5 // pred_check
      %p519 = pneg %p518
    $region50: #{mlpgin_forward.3} parent=5 // pred_check_branch
      %521 = sbr.rel (%p519) target = $region52
    $region51: #{mlpgin_forward.3} parent=5 // pred_region
      %s522 = ssub.s32 %s12, 2
      // Predicated region
      $region53: #{mlpgin_forward.3} parent=51 // pred_check
        %p523 = pneg %p172
      $region54: #{mlpgin_forward.3} parent=51 // pred_check_branch
        %525 = sbr.rel (%p523) target = $region56
      $region55: #{mlpgin_forward.3} parent=51 // pred_region
        %s526 = smul.u32 16, %s18
        %p527 = scmp.lt.s32.totalorder %s526, 31
        %s528 = scalar_select %p527, %s526, 31
        %s529 = smul.addr %s528, 8
        %s530 = scalar_lea.vmem %s6, %s529
      $region56: #{mlpgin_forward.3} parent=51 // pred_fallthru
        _
    $region52: #{mlpgin_forward.3} parent=5 // pred_fallthru
      _
  $region6: #{mlpgin_forward.3} parent=0 // loop_footer
    %s16 = sadd.s32 1, %s12
  $region7: #{mlpgin_forward.3} parent=0 // loop_footer_branch
    %11 = sbr.rel target = $region3
  $region8: #{mlpgin_forward.3} parent=0 // loop_exit
    _

</llo_original>
